<compile_context>
chip_gen: v7x
topology: tpu7x:2x2x1
jax: 0.10.0
libtpu: 0.0.40
codegen_flags: <defaults>
</compile_context>

<pallas_src>
import jax
import jax.numpy as jnp
from jax.experimental import pallas as pl
from jax.experimental.pallas import tpu as pltpu


def _round_up(a: int, b: int) -> int:
    return -(-a // b) * b


def _custom_loss_kernel(pw_ref, x_ref, o_ref):
    # pw_ref: (1,1) f32 scalar in SMEM (precomputed piecewise term).
    # x_ref/o_ref: (tr, lanes) tiles in VMEM; cast to f32 in-register.
    x = x_ref[...].astype(jnp.float32)
    o_ref[...] = (jnp.exp2(4.0 * x) + pw_ref[0, 0]).astype(o_ref.dtype)


def _piecewise(y) -> jax.Array:
    y32 = jnp.asarray(y, jnp.float32)
    # NOTE: both branches of jnp.where are evaluated; 1/0 -> inf is discarded.
    return jnp.where(y32 > 0.0, 1.0 / y32, (10000.0 * (-y32)) ** 2)


def _pick_lanes(n128: int, max_lanes: int) -> int:
    # n128 is a multiple of 128. Pick the widest lane count (multiple of 128,
    # <= max_lanes) dividing n128 so the reshape is metadata-only and the
    # output slab stays lane-dense (unmasked vst).
    m = n128 // 128
    max_l = max(1, max_lanes // 128)
    for l in range(min(m, max_l), 0, -1):
        if m % l == 0:
            return 128 * l
    return 128


def custom_loss(x: jax.Array, y, *, tile_rows: int = 1024, max_lanes: int = 1024,
                min_pallas_elems: int = 65536) -> jax.Array:
    """Elementwise 2**(4*x) + Piecewise(y). x: any shape, y: scalar."""
    orig_shape = x.shape
    out_dtype = x.dtype if jnp.issubdtype(x.dtype, jnp.floating) else jnp.float32
    pw = _piecewise(y)  # scalar, f32, hoisted out of the kernel
    n = int(x.size)

    # Tiny inputs: fixed pallas_call launch overhead dominates -> plain XLA.
    if n < min_pallas_elems:
        xf = x.astype(jnp.float32)
        return (jnp.exp2(4.0 * xf) + pw).astype(out_dtype).reshape(orig_shape)

    pw2d = jnp.reshape(pw, (1, 1))

    x_flat = x.reshape(-1)
    padded = (n % 128) != 0
    if padded:
        # Fallback only for truly unaligned sizes: pad to next multiple of 128.
        n_pad = _round_up(n, 128)
        x_flat = jnp.pad(x_flat, (0, n_pad - n))
    else:
        n_pad = n  # fast path: no copy, reshape below is metadata-only

    lanes = _pick_lanes(n_pad, max_lanes)
    rows = n_pad // lanes
    x2d = x_flat.reshape(rows, lanes)

    # Row tile: multiple of 8 (or the full row extent when rows < 8).
    if rows < 8:
        tr = rows
    elif rows % 8 == 0:
        tr = min(tile_rows, rows)
    else:
        tr = min(tile_rows, _round_up(rows, 8))
    # Prefer >= 2 grid steps so the "parallel" axis can shard across both
    # TensorCores on v7x (no-op on single-TC v5e/v6e).
    if pl.cdiv(rows, tr) < 2 and rows >= 16:
        tr = _round_up(pl.cdiv(rows, 2), 8)

    grid = (pl.cdiv(rows, tr),)

    in_bytes = n * jnp.dtype(x.dtype).itemsize
    out_bytes = n * jnp.dtype(out_dtype).itemsize
    cost = pl.CostEstimate(flops=2 * n, transcendentals=n,
                           bytes_accessed=in_bytes + out_bytes + 4)

    out2d = pl.pallas_call(
        _custom_loss_kernel,
        out_shape=jax.ShapeDtypeStruct((rows, lanes), out_dtype),
        grid=grid,
        in_specs=[
            pl.BlockSpec(memory_space=pltpu.SMEM),        # pw scalar (SMEM)
            # TODO(synk): add pipeline_mode=pl.Buffered(3) here if profiling
            # ever shows exposed input DMA (0-5% at most).
            pl.BlockSpec((tr, lanes), lambda i: (i, 0)),  # x tile (VMEM)
        ],
        out_specs=pl.BlockSpec((tr, lanes), lambda i: (i, 0)),
        compiler_params=pltpu.CompilerParams(
            dimension_semantics=("parallel",),
            # Headroom for 4 MiB double-buffered in+out tiles; safe on v5e/v6e
            # (128 MiB physical) and under v7x's 64 MiB physical VMEM.
            vmem_limit_bytes=48 << 20,
        ),
        cost_estimate=cost,
    )(pw2d, x2d)

    if padded:
        return out2d.reshape(-1)[:n].reshape(orig_shape)
    return out2d.reshape(orig_shape)


def _custom_loss_ref(x, y):
    xf = jnp.asarray(x, jnp.float32)
    yf = jnp.asarray(y, jnp.float32)
    pw = jnp.where(yf > 0.0, 1.0 / yf, (10000.0 * (-yf)) ** 2)
    return jnp.exp2(4.0 * xf) + pw


if __name__ == "__main__":
    key = jax.random.PRNGKey(0)
    kx, ky, kz, kw = jax.random.split(key, 4)

    y_neg = -jnp.abs(jax.random.normal(ky, (), jnp.float32)) - 0.25  # y <= 0 branch
    y_pos = jnp.abs(jax.random.normal(ky, (), jnp.float32)) + 0.5    # y > 0 branch

    # 1) Aligned f32 input -> no-copy Pallas fast path (both piecewise branches).
    x = jax.random.normal(kx, (256, 512), jnp.float32)
    out = jax.block_until_ready(custom_loss(x, y_neg, min_pallas_elems=0))
    assert out.shape == x.shape and out.dtype == x.dtype
    assert jnp.allclose(out, _custom_loss_ref(x, y_neg), rtol=1e-5, atol=1e-5), "y<=0 branch"
    out = jax.block_until_ready(custom_loss(x, y_pos, min_pallas_elems=0))
    assert jnp.allclose(out, _custom_loss_ref(x, y_pos), rtol=1e-5, atol=1e-5), "y>0 branch"

    # 2) Small aligned shape forced through the kernel.
    x8 = jax.random.normal(kz, (8, 128), jnp.float32)
    out8 = jax.block_until_ready(custom_loss(x8, y_neg, min_pallas_elems=0))
    assert jnp.allclose(out8, _custom_loss_ref(x8, y_neg), rtol=1e-5, atol=1e-5), "small aligned"

    # 3) Non-aligned shape -> minimal pad/slice fallback path.
    x5 = jax.random.normal(kw, (5, 37), jnp.float32)
    out5 = jax.block_until_ready(custom_loss(x5, y_neg, min_pallas_elems=0))
    assert out5.shape == x5.shape
    assert jnp.allclose(out5, _custom_loss_ref(x5, y_neg), rtol=1e-5, atol=1e-5), "padded path"

    # 4) bf16 input: kernel streams bf16, casts in-register, writes bf16.
    xb = jax.random.normal(kx, (128, 256), jnp.float32).astype(jnp.bfloat16)
    outb = jax.block_until_ready(custom_loss(xb, y_pos, min_pallas_elems=0))
    assert outb.dtype == jnp.bfloat16 and outb.shape == xb.shape
    assert jnp.allclose(outb.astype(jnp.float32), _custom_loss_ref(xb, y_pos),
                        rtol=3e-2, atol=3e-2), "bf16 path"

    # 5) Tiny-input XLA fast path (default threshold).
    outt = jax.block_until_ready(custom_loss(x8, y_pos))
    assert jnp.allclose(outt, _custom_loss_ref(x8, y_pos), rtol=1e-5, atol=1e-5), "tiny path"

    print("KERNEL_OK")
</pallas_src>

<mosaic_0001>
module attributes {stable_mosaic.version = 11 : i64} {
  func.func @_custom_loss_kernel(%arg0: i32, %arg1: memref<1x1xf32, #tpu.memory_space<smem>>, %arg2: memref<64x1024xf32, #tpu.memory_space<vmem>>, %arg3: memref<64x1024xf32, #tpu.memory_space<vmem>>) attributes {dimension_semantics = [#tpu.dimension_semantics<parallel>], iteration_bounds = array<i64: 2>, scalar_prefetch = 0 : i64, scratch_operands = 0 : i64, tpu.core_type = #tpu.core_type<tc>, window_params = [{transform_indices = @transform_0, window_bounds = array<i64: 1, 1>}, {transform_indices = @transform_1, window_bounds = array<i64: 64, 1024>}, {transform_indices = @transform_2, window_bounds = array<i64: 64, 1024>}]} {
    %c0 = arith.constant 0 : index
    %c0_0 = arith.constant 0 : index
    %0 = vector.load %arg2[%c0, %c0_0] : memref<64x1024xf32, #tpu.memory_space<vmem>>, vector<64x1024xf32>
    %cst = arith.constant 4.000000e+00 : f32
    %1 = vector.broadcast %cst : f32 to vector<64x1024xf32>
    %2 = arith.mulf %1, %0 : vector<64x1024xf32>
    %3 = math.exp2 %2 : vector<64x1024xf32>
    %c0_1 = arith.constant 0 : index
    %c0_2 = arith.constant 0 : index
    %4 = memref.load %arg1[%c0_1, %c0_2] : memref<1x1xf32, #tpu.memory_space<smem>>
    %5 = vector.broadcast %4 : f32 to vector<64x1024xf32>
    %6 = arith.addf %3, %5 : vector<64x1024xf32>
    %c0_3 = arith.constant 0 : index
    %c0_4 = arith.constant 0 : index
    %7 = vector.load %arg3[%c0_3, %c0_4] : memref<64x1024xf32, #tpu.memory_space<vmem>>, vector<64x1024xf32>
    tpu.vector_store %arg3[%c0_3, %c0_4], %6 {strides = array<i32>} : memref<64x1024xf32, #tpu.memory_space<vmem>>, vector<64x1024xf32>,
    return
  }
  func.func @transform_0(%arg0: i32) -> (i32, i32) {
    %c0_i32 = arith.constant 0 : i32
    %c0_i32_0 = arith.constant 0 : i32
    %c0_i32_1 = arith.constant 0 : i32
    return %c0_i32, %c0_i32_0 : i32, i32
  }
  func.func @transform_1(%arg0: i32) -> (i32, i32) {
    %c0_i32 = arith.constant 0 : i32
    %c0_i32_0 = arith.constant 0 : i32
    return %arg0, %c0_i32 : i32, i32
  }
  func.func @transform_2(%arg0: i32) -> (i32, i32) {
    %c0_i32 = arith.constant 0 : i32
    %c0_i32_0 = arith.constant 0 : i32
    return %arg0, %c0_i32 : i32, i32
  }
}

</mosaic_0001>

<llo_original>
// kernel: tpu_custom_call.1
$region0: #{tpu_custom_call.1}
  #allocation0 [shape = 'u32[]', space=smem, size = 0x4, offset = 0x4, fixed_abs, tag = 'smem constant byte address 0x4 - core index']
  #allocation1 [shape = 'u32[144,128]{1,0:T(1,128)}', space=vmem, size = 0x12000, scoped, tag = 'internal scratch']
  #allocation2 [shape = 'f32[1,1]{1,0:T(1,128)S(6)}', space=smem, size = 0x200, scoped, tag = 'scoped memory for tpu_custom_call.1']
  %s0 = inlined_call_operand.<no memory space> [shape: f32[1,1], index: 0, kind: input, shape index: {}]
  %s1 = inlined_call_operand.hbm [shape: f32[128,1024], index: 1, kind: input, shape index: {}]
  %s2 = inlined_call_operand.hbm [shape: f32[128,1024], index: 2, kind: output, shape index: {}]
  %s3 = sld [smem:[#allocation0]]
  $region45: #{tpu_custom_call.1} parent=0
    _
  %s5 = ssub.s32 1, %s3
  %s6 = scalar_select 0, %s5, %s3
  %7 = sst [smem:[#allocation2]] %s0
  $region1: #{tpu_custom_call.1} parent=0
    #allocation3 [shape = 'u8[524288]{0}', space=vmem, size = 0x80000, scoped, tag = 'input window, operand 1']
    #allocation4 [shape = 's32[2]{0}', space=sflag, size = 0x8, scoped, tag = 'scoped memory for tpu_custom_call.1']
    #allocation5 [shape = 's32[2]{0}', space=sflag, size = 0x8, scoped, tag = 'scoped memory for tpu_custom_call.1']
    #allocation6 [shape = 'u8[524288]{0}', space=vmem, size = 0x80000, scoped, tag = 'output window, operand 0']
    %8 = vsyncpa [#allocation4], 0
    %s9 = scalar_lea.sflag [#allocation4], 1
    %10 = vsyncpa %s9, 0
    %11 = vsyncpa [#allocation5], 0
    %s12 = scalar_lea.sflag [#allocation5], 1
    %13 = vsyncpa %s12, 0
    loop: start=0, step=1, limit=4
    $region2: #{tpu_custom_call.1} parent=1 // loop_pre_header
      _
    $region3: #{tpu_custom_call.1} parent=1 // loop_header
      %s15 = sphi 0, %s19
      %p16 = scmp.ge.s32.totalorder %s15, 4
      %s23 = sphi 0, %s23
      %s25 = sphi 0, %s23
      %s26 = sphi 0, %s25
      %s40 = sphi 0, %s26
      %s46 = sphi 0, %s48
      %s49 = sphi 0, %s46
      %s50 = sphi 0, %s49
      %s66 = sphi 0, %s50
      %s72 = sphi 0, %s74
      %s75 = sphi 0, %s72
      %s76 = sphi 0, %s75
      %s92 = sphi 0, %s76
    $region4: #{tpu_custom_call.1} parent=1 // loop_header_branch
      %18 = sbr.rel (%p16) target = $region8
    $region5: #{tpu_custom_call.1} parent=1 // loop_body
      %s20 = ssub.s32 %s15, 1
      %s21 = ssub.s32 %s15, 2
      %s22 = sadd.s32 %s15, 1
      %s24 = sadd.s32 %s23, 1
      %p27 = scmp.eq.s32.totalorder %s15, 1
      %p28 = scmp.ne.s32.totalorder %s23, %s25
      %p29 = scmp.eq.s32.totalorder %s15, 0
      %p30 = por %p28, %p29
      %p31 = scmp.ne.s32.totalorder %s23, %s25
      %p32 = scmp.eq.s32.totalorder %s20, 1
      %p33 = por %p31, %p32
      %p34 = scmp.ne.s32.totalorder %s25, %s26
      %p35 = scmp.eq.s32.totalorder %s20, 0
      %p36 = por %p34, %p35
      %p37 = scmp.ne.s32.totalorder %s25, %s26
      %p38 = scmp.eq.s32.totalorder %s21, 1
      %p39 = por %p37, %p38
      %p41 = scmp.ne.s32.totalorder %s26, %s40
      %p42 = scmp.eq.s32.totalorder %s21, 0
      %p43 = por %p41, %p42
      %s44 = ssub.s32 %s15, %s22
      %p45 = scmp.eq.s32.totalorder %s44, 0
      %s47 = sadd.s32 %s46, 1
      %s48 = scalar_select %p45, %s46, %s47
      %p51 = pneg %p45
      %p52 = scmp.eq.s32.totalorder %s15, 1
      %p53 = por %p51, %p52
      %p54 = scmp.ne.s32.totalorder %s46, %s49
      %p55 = scmp.eq.s32.totalorder %s15, 0
      %p56 = por %p54, %p55
      %p57 = scmp.ne.s32.totalorder %s46, %s49
      %p58 = scmp.eq.s32.totalorder %s20, 1
      %p59 = por %p57, %p58
      %p60 = scmp.ne.s32.totalorder %s49, %s50
      %p61 = scmp.eq.s32.totalorder %s20, 0
      %p62 = por %p60, %p61
      %p63 = scmp.ne.s32.totalorder %s49, %s50
      %p64 = scmp.eq.s32.totalorder %s21, 1
      %p65 = por %p63, %p64
      %p67 = scmp.ne.s32.totalorder %s50, %s66
      %p68 = scmp.eq.s32.totalorder %s21, 0
      %p69 = por %p67, %p68
      %s70 = ssub.s32 %s15, %s22
      %p71 = scmp.eq.s32.totalorder %s70, 0
      %s73 = sadd.s32 %s72, 1
      %s74 = scalar_select %p71, %s72, %s73
      %p77 = pneg %p71
      %p78 = scmp.eq.s32.totalorder %s15, 1
      %p79 = por %p77, %p78
      %p80 = scmp.ne.s32.totalorder %s72, %s75
      %p81 = scmp.eq.s32.totalorder %s15, 0
      %p82 = por %p80, %p81
      %p83 = scmp.ne.s32.totalorder %s72, %s75
      %p84 = scmp.eq.s32.totalorder %s20, 1
      %p85 = por %p83, %p84
      %p86 = scmp.ne.s32.totalorder %s75, %s76
      %p87 = scmp.eq.s32.totalorder %s20, 0
      %p88 = por %p86, %p87
      %p89 = scmp.ne.s32.totalorder %s75, %s76
      %p90 = scmp.eq.s32.totalorder %s21, 1
      %p91 = por %p89, %p90
      %p93 = scmp.ne.s32.totalorder %s76, %s92
      %p94 = scmp.eq.s32.totalorder %s21, 0
      %p95 = por %p93, %p94
      %p96 = scmp.le.s32.totalorder 1, %s15
      %p97 = scmp.lt.s32.totalorder %s15, 3
      %p98 = pnand %p96, %p97
      %p99 = pneg %p98
      // Predicated region
      $region9: #{tpu_custom_call.1} parent=5 // pred_check
        _
      $region10: #{tpu_custom_call.1} parent=5 // pred_check_branch
        %101 = sbr.rel (%p98) target = $region12
      $region11: #{tpu_custom_call.1} parent=5 // pred_region
        %s102 = ssub.s32 %s15, 1
        // Predicated region
        $region13: #{tpu_custom_call.1} parent=11 // pred_check
          %p103 = pneg %p36
        $region14: #{tpu_custom_call.1} parent=11 // pred_check_branch
          %105 = sbr.rel (%p103) target = $region16
        $region15: #{tpu_custom_call.1} parent=11 // pred_region
          _
        $region16: #{tpu_custom_call.1} parent=11 // pred_fallthru
          _
      $region12: #{tpu_custom_call.1} parent=5 // pred_fallthru
        _
      %p106 = scmp.lt.s32.totalorder %s15, 2
      // Predicated region
      $region17: #{tpu_custom_call.1} parent=5 // pred_check
        %p107 = pneg %p106
      $region18: #{tpu_custom_call.1} parent=5 // pred_check_branch
        %109 = sbr.rel (%p107) target = $region20
      $region19: #{tpu_custom_call.1} parent=5 // pred_region
        // Predicated region
        $region21: #{tpu_custom_call.1} parent=19 // pred_check
          %p110 = pneg %p56
        $region22: #{tpu_custom_call.1} parent=19 // pred_check_branch
          %112 = sbr.rel (%p110) target = $region24
        $region23: #{tpu_custom_call.1} parent=19 // pred_region
          %s113 = sand.u32 %s46, 1
          %s114 = scalar_lea.sflag [#allocation4], %s113
          %s115 = sand.u32 %s46, 1
          %s116 = smul.addr %s115, 512
          %s117 = scalar_lea.vmem [#allocation3], %s116
          %s118 = smul.u32 8, %s15
          %s120 = ssub.s32 8192, 8192
          %121 = vsyncadd %s114, %s120
          %s122 = smul.addr %s118, 8
          %s123 = smul.addr %s122, 128
          %s124 = scalar_lea.hbm %s1, %s123
          %s125 = sshll.u32 %s117, 4
          %s126 = int_to_ptr.vmem [resolvable:$true] %s125
          %131 = dma.hbm_to_vmem [thread:$0]  %s124, 8192, %s126, %s114, 1024, 1024, 64
        $region24: #{tpu_custom_call.1} parent=19 // pred_fallthru
          _
      $region20: #{tpu_custom_call.1} parent=5 // pred_fallthru
        _
      %p132 = scmp.le.s32.totalorder 1, %s15
      %p133 = scmp.lt.s32.totalorder %s15, 3
      %p134 = pnand %p132, %p133
      %p135 = pneg %p134
      // Predicated region
      $region25: #{tpu_custom_call.1} parent=5 // pred_check
        _
      $region26: #{tpu_custom_call.1} parent=5 // pred_check_branch
        %137 = sbr.rel (%p134) target = $region28
      $region27: #{tpu_custom_call.1} parent=5 // pred_region
        %s138 = ssub.s32 %s15, 1
        %s139 = sand.u32 %s49, 1
        %s140 = scalar_lea.sflag [#allocation4], %s139
        %s141 = sand.u32 %s49, 1
        %s142 = smul.addr %s141, 512
        %s143 = scalar_lea.vmem [#allocation3], %s142
        // Predicated region
        $region29: #{tpu_custom_call.1} parent=27 // pred_check
          %p144 = pneg %p62
        $region30: #{tpu_custom_call.1} parent=27 // pred_check_branch
          %146 = sbr.rel (%p144) target = $region32
        $region31: #{tpu_custom_call.1} parent=27 // pred_region
          %147 = dma.done %s140, 8192
        $region32: #{tpu_custom_call.1} parent=27 // pred_fallthru
          _
        %p148 = pneg %p36
        %p149 = pneg %p33
        %s150 = sand.u32 %s49, 1
        %s151 = scalar_lea.sflag [#allocation4], %s150
        %s152 = sand.u32 %s49, 1
        %s153 = smul.addr %s152, 512
        %s154 = scalar_lea.vmem [#allocation3], %s153
        %p155 = pneg %p62
        %p156 = pneg %p59
        %p157 = pneg %p88
        %p158 = pneg %p85
        %s159 = sand.u32 %s75, 1
        %s160 = scalar_lea.sflag [#allocation5], %s159
        %s161 = sand.u32 %s75, 1
        %s162 = smul.addr %s161, 512
        %s163 = scalar_lea.vmem [#allocation6], %s162
        %s164 = smul.u32 8, %s20
        %s165 = smul.u32 8, %s20
        %v166 = vld [vmem:[%s143] sm:$0xff]
        %v167 = vld [vmem:[%s143 + $0x8] sm:$0xff]
        %v168 = vld [vmem:[%s143 + $0x10] sm:$0xff]
        %v169 = vld [vmem:[%s143 + $0x18] sm:$0xff]
        %v170 = vld [vmem:[%s143 + $0x20] sm:$0xff]
        %v171 = vld [vmem:[%s143 + $0x28] sm:$0xff]
        %v172 = vld [vmem:[%s143 + $0x30] sm:$0xff]
        %v173 = vld [vmem:[%s143 + $0x38] sm:$0xff]
        %v174 = vld [vmem:[%s143 + $0x40] sm:$0xff]
        %v175 = vld [vmem:[%s143 + $0x48] sm:$0xff]
        %v176 = vld [vmem:[%s143 + $0x50] sm:$0xff]
        %v177 = vld [vmem:[%s143 + $0x58] sm:$0xff]
        %v178 = vld [vmem:[%s143 + $0x60] sm:$0xff]
        %v179 = vld [vmem:[%s143 + $0x68] sm:$0xff]
        %v180 = vld [vmem:[%s143 + $0x70] sm:$0xff]
        %v181 = vld [vmem:[%s143 + $0x78] sm:$0xff]
        %v182 = vld [vmem:[%s143 + $0x80] sm:$0xff]
        %v183 = vld [vmem:[%s143 + $0x88] sm:$0xff]
        %v184 = vld [vmem:[%s143 + $0x90] sm:$0xff]
        %v185 = vld [vmem:[%s143 + $0x98] sm:$0xff]
        %v186 = vld [vmem:[%s143 + $0xa0] sm:$0xff]
        %v187 = vld [vmem:[%s143 + $0xa8] sm:$0xff]
        %v188 = vld [vmem:[%s143 + $0xb0] sm:$0xff]
        %v189 = vld [vmem:[%s143 + $0xb8] sm:$0xff]
        %v190 = vld [vmem:[%s143 + $0xc0] sm:$0xff]
        %v191 = vld [vmem:[%s143 + $0xc8] sm:$0xff]
        %v192 = vld [vmem:[%s143 + $0xd0] sm:$0xff]
        %v193 = vld [vmem:[%s143 + $0xd8] sm:$0xff]
        %v194 = vld [vmem:[%s143 + $0xe0] sm:$0xff]
        %v195 = vld [vmem:[%s143 + $0xe8] sm:$0xff]
        %v196 = vld [vmem:[%s143 + $0xf0] sm:$0xff]
        %v197 = vld [vmem:[%s143 + $0xf8] sm:$0xff]
        %v198 = vld [vmem:[%s143 + $0x100] sm:$0xff]
        %v199 = vld [vmem:[%s143 + $0x108] sm:$0xff]
        %v200 = vld [vmem:[%s143 + $0x110] sm:$0xff]
        %v201 = vld [vmem:[%s143 + $0x118] sm:$0xff]
        %v202 = vld [vmem:[%s143 + $0x120] sm:$0xff]
        %v203 = vld [vmem:[%s143 + $0x128] sm:$0xff]
        %v204 = vld [vmem:[%s143 + $0x130] sm:$0xff]
        %v205 = vld [vmem:[%s143 + $0x138] sm:$0xff]
        %v206 = vld [vmem:[%s143 + $0x140] sm:$0xff]
        %v207 = vld [vmem:[%s143 + $0x148] sm:$0xff]
        %v208 = vld [vmem:[%s143 + $0x150] sm:$0xff]
        %v209 = vld [vmem:[%s143 + $0x158] sm:$0xff]
        %v210 = vld [vmem:[%s143 + $0x160] sm:$0xff]
        %v211 = vld [vmem:[%s143 + $0x168] sm:$0xff]
        %v212 = vld [vmem:[%s143 + $0x170] sm:$0xff]
        %v213 = vld [vmem:[%s143 + $0x178] sm:$0xff]
        %v214 = vld [vmem:[%s143 + $0x180] sm:$0xff]
        %v215 = vld [vmem:[%s143 + $0x188] sm:$0xff]
        %v216 = vld [vmem:[%s143 + $0x190] sm:$0xff]
        %v217 = vld [vmem:[%s143 + $0x198] sm:$0xff]
        %v218 = vld [vmem:[%s143 + $0x1a0] sm:$0xff]
        %v219 = vld [vmem:[%s143 + $0x1a8] sm:$0xff]
        %v220 = vld [vmem:[%s143 + $0x1b0] sm:$0xff]
        %v221 = vld [vmem:[%s143 + $0x1b8] sm:$0xff]
        %v222 = vld [vmem:[%s143 + $0x1c0] sm:$0xff]
        %v223 = vld [vmem:[%s143 + $0x1c8] sm:$0xff]
        %v224 = vld [vmem:[%s143 + $0x1d0] sm:$0xff]
        %v225 = vld [vmem:[%s143 + $0x1d8] sm:$0xff]
        %v226 = vld [vmem:[%s143 + $0x1e0] sm:$0xff]
        %v227 = vld [vmem:[%s143 + $0x1e8] sm:$0xff]
        %v228 = vld [vmem:[%s143 + $0x1f0] sm:$0xff]
        %v229 = vld [vmem:[%s143 + $0x1f8] sm:$0xff]
        %v230 = vmul.f32 %v166, 4.0
        %v231 = vmul.f32 %v167, 4.0
        %v232 = vmul.f32 %v168, 4.0
        %v233 = vmul.f32 %v169, 4.0
        %v234 = vmul.f32 %v170, 4.0
        %v235 = vmul.f32 %v171, 4.0
        %v236 = vmul.f32 %v172, 4.0
        %v237 = vmul.f32 %v173, 4.0
        %v238 = vmul.f32 %v174, 4.0
        %v239 = vmul.f32 %v175, 4.0
        %v240 = vmul.f32 %v176, 4.0
        %v241 = vmul.f32 %v177, 4.0
        %v242 = vmul.f32 %v178, 4.0
        %v243 = vmul.f32 %v179, 4.0
        %v244 = vmul.f32 %v180, 4.0
        %v245 = vmul.f32 %v181, 4.0
        %v246 = vmul.f32 %v182, 4.0
        %v247 = vmul.f32 %v183, 4.0
        %v248 = vmul.f32 %v184, 4.0
        %v249 = vmul.f32 %v185, 4.0
        %v250 = vmul.f32 %v186, 4.0
        %v251 = vmul.f32 %v187, 4.0
        %v252 = vmul.f32 %v188, 4.0
        %v253 = vmul.f32 %v189, 4.0
        %v254 = vmul.f32 %v190, 4.0
        %v255 = vmul.f32 %v191, 4.0
        %v256 = vmul.f32 %v192, 4.0
        %v257 = vmul.f32 %v193, 4.0
        %v258 = vmul.f32 %v194, 4.0
        %v259 = vmul.f32 %v195, 4.0
        %v260 = vmul.f32 %v196, 4.0
        %v261 = vmul.f32 %v197, 4.0
        %v262 = vmul.f32 %v198, 4.0
        %v263 = vmul.f32 %v199, 4.0
        %v264 = vmul.f32 %v200, 4.0
        %v265 = vmul.f32 %v201, 4.0
        %v266 = vmul.f32 %v202, 4.0
        %v267 = vmul.f32 %v203, 4.0
        %v268 = vmul.f32 %v204, 4.0
        %v269 = vmul.f32 %v205, 4.0
        %v270 = vmul.f32 %v206, 4.0
        %v271 = vmul.f32 %v207, 4.0
        %v272 = vmul.f32 %v208, 4.0
        %v273 = vmul.f32 %v209, 4.0
        %v274 = vmul.f32 %v210, 4.0
        %v275 = vmul.f32 %v211, 4.0
        %v276 = vmul.f32 %v212, 4.0
        %v277 = vmul.f32 %v213, 4.0
        %v278 = vmul.f32 %v214, 4.0
        %v279 = vmul.f32 %v215, 4.0
        %v280 = vmul.f32 %v216, 4.0
        %v281 = vmul.f32 %v217, 4.0
        %v282 = vmul.f32 %v218, 4.0
        %v283 = vmul.f32 %v219, 4.0
        %v284 = vmul.f32 %v220, 4.0
        %v285 = vmul.f32 %v221, 4.0
        %v286 = vmul.f32 %v222, 4.0
        %v287 = vmul.f32 %v223, 4.0
        %v288 = vmul.f32 %v224, 4.0
        %v289 = vmul.f32 %v225, 4.0
        %v290 = vmul.f32 %v226, 4.0
        %v291 = vmul.f32 %v227, 4.0
        %v292 = vmul.f32 %v228, 4.0
        %v293 = vmul.f32 %v229, 4.0
        %v294 = vpow.pop %v230
        %v295 = vpow.pop %v231
        %v296 = vpow.pop %v232
        %v297 = vpow.pop %v233
        %v298 = vpow.pop %v234
        %v299 = vpow.pop %v235
        %v300 = vpow.pop %v236
        %v301 = vpow.pop %v237
        %v302 = vpow.pop %v238
        %v303 = vpow.pop %v239
        %v304 = vpow.pop %v240
        %v305 = vpow.pop %v241
        %v306 = vpow.pop %v242
        %v307 = vpow.pop %v243
        %v308 = vpow.pop %v244
        %v309 = vpow.pop %v245
        %v310 = vpow.pop %v246
        %v311 = vpow.pop %v247
        %v312 = vpow.pop %v248
        %v313 = vpow.pop %v249
        %v314 = vpow.pop %v250
        %v315 = vpow.pop %v251
        %v316 = vpow.pop %v252
        %v317 = vpow.pop %v253
        %v318 = vpow.pop %v254
        %v319 = vpow.pop %v255
        %v320 = vpow.pop %v256
        %v321 = vpow.pop %v257
        %v322 = vpow.pop %v258
        %v323 = vpow.pop %v259
        %v324 = vpow.pop %v260
        %v325 = vpow.pop %v261
        %v326 = vpow.pop %v262
        %v327 = vpow.pop %v263
        %v328 = vpow.pop %v264
        %v329 = vpow.pop %v265
        %v330 = vpow.pop %v266
        %v331 = vpow.pop %v267
        %v332 = vpow.pop %v268
        %v333 = vpow.pop %v269
        %v334 = vpow.pop %v270
        %v335 = vpow.pop %v271
        %v336 = vpow.pop %v272
        %v337 = vpow.pop %v273
        %v338 = vpow.pop %v274
        %v339 = vpow.pop %v275
        %v340 = vpow.pop %v276
        %v341 = vpow.pop %v277
        %v342 = vpow.pop %v278
        %v343 = vpow.pop %v279
        %v344 = vpow.pop %v280
        %v345 = vpow.pop %v281
        %v346 = vpow.pop %v282
        %v347 = vpow.pop %v283
        %v348 = vpow.pop %v284
        %v349 = vpow.pop %v285
        %v350 = vpow.pop %v286
        %v351 = vpow.pop %v287
        %v352 = vpow.pop %v288
        %v353 = vpow.pop %v289
        %v354 = vpow.pop %v290
        %v355 = vpow.pop %v291
        %v356 = vpow.pop %v292
        %v357 = vpow.pop %v293
        %s358 = sld [smem:[#allocation2]]
        %v359 = vstv %s358
        %v360 = vadd.f32 %v294, %v359
        %v361 = vadd.f32 %v295, %v359
        %v362 = vadd.f32 %v296, %v359
        %v363 = vadd.f32 %v297, %v359
        %v364 = vadd.f32 %v298, %v359
        %v365 = vadd.f32 %v299, %v359
        %v366 = vadd.f32 %v300, %v359
        %v367 = vadd.f32 %v301, %v359
        %v368 = vadd.f32 %v302, %v359
        %v369 = vadd.f32 %v303, %v359
        %v370 = vadd.f32 %v304, %v359
        %v371 = vadd.f32 %v305, %v359
        %v372 = vadd.f32 %v306, %v359
        %v373 = vadd.f32 %v307, %v359
        %v374 = vadd.f32 %v308, %v359
        %v375 = vadd.f32 %v309, %v359
        %v376 = vadd.f32 %v310, %v359
        %v377 = vadd.f32 %v311, %v359
        %v378 = vadd.f32 %v312, %v359
        %v379 = vadd.f32 %v313, %v359
        %v380 = vadd.f32 %v314, %v359
        %v381 = vadd.f32 %v315, %v359
        %v382 = vadd.f32 %v316, %v359
        %v383 = vadd.f32 %v317, %v359
        %v384 = vadd.f32 %v318, %v359
        %v385 = vadd.f32 %v319, %v359
        %v386 = vadd.f32 %v320, %v359
        %v387 = vadd.f32 %v321, %v359
        %v388 = vadd.f32 %v322, %v359
        %v389 = vadd.f32 %v323, %v359
        %v390 = vadd.f32 %v324, %v359
        %v391 = vadd.f32 %v325, %v359
        %v392 = vadd.f32 %v326, %v359
        %v393 = vadd.f32 %v327, %v359
        %v394 = vadd.f32 %v328, %v359
        %v395 = vadd.f32 %v329, %v359
        %v396 = vadd.f32 %v330, %v359
        %v397 = vadd.f32 %v331, %v359
        %v398 = vadd.f32 %v332, %v359
        %v399 = vadd.f32 %v333, %v359
        %v400 = vadd.f32 %v334, %v359
        %v401 = vadd.f32 %v335, %v359
        %v402 = vadd.f32 %v336, %v359
        %v403 = vadd.f32 %v337, %v359
        %v404 = vadd.f32 %v338, %v359
        %v405 = vadd.f32 %v339, %v359
        %v406 = vadd.f32 %v340, %v359
        %v407 = vadd.f32 %v341, %v359
        %v408 = vadd.f32 %v342, %v359
        %v409 = vadd.f32 %v343, %v359
        %v410 = vadd.f32 %v344, %v359
        %v411 = vadd.f32 %v345, %v359
        %v412 = vadd.f32 %v346, %v359
        %v413 = vadd.f32 %v347, %v359
        %v414 = vadd.f32 %v348, %v359
        %v415 = vadd.f32 %v349, %v359
        %v416 = vadd.f32 %v350, %v359
        %v417 = vadd.f32 %v351, %v359
        %v418 = vadd.f32 %v352, %v359
        %v419 = vadd.f32 %v353, %v359
        %v420 = vadd.f32 %v354, %v359
        %v421 = vadd.f32 %v355, %v359
        %v422 = vadd.f32 %v356, %v359
        %v423 = vadd.f32 %v357, %v359
        %424 = vst [vmem:[%s163] sm:$0xff] %v360
        %425 = vst [vmem:[%s163 + $0x8] sm:$0xff] %v361
        %426 = vst [vmem:[%s163 + $0x10] sm:$0xff] %v362
        %427 = vst [vmem:[%s163 + $0x18] sm:$0xff] %v363
        %428 = vst [vmem:[%s163 + $0x20] sm:$0xff] %v364
        %429 = vst [vmem:[%s163 + $0x28] sm:$0xff] %v365
        %430 = vst [vmem:[%s163 + $0x30] sm:$0xff] %v366
        %431 = vst [vmem:[%s163 + $0x38] sm:$0xff] %v367
        %432 = vst [vmem:[%s163 + $0x40] sm:$0xff] %v368
        %433 = vst [vmem:[%s163 + $0x48] sm:$0xff] %v369
        %434 = vst [vmem:[%s163 + $0x50] sm:$0xff] %v370
        %435 = vst [vmem:[%s163 + $0x58] sm:$0xff] %v371
        %436 = vst [vmem:[%s163 + $0x60] sm:$0xff] %v372
        %437 = vst [vmem:[%s163 + $0x68] sm:$0xff] %v373
        %438 = vst [vmem:[%s163 + $0x70] sm:$0xff] %v374
        %439 = vst [vmem:[%s163 + $0x78] sm:$0xff] %v375
        %440 = vst [vmem:[%s163 + $0x80] sm:$0xff] %v376
        %441 = vst [vmem:[%s163 + $0x88] sm:$0xff] %v377
        %442 = vst [vmem:[%s163 + $0x90] sm:$0xff] %v378
        %443 = vst [vmem:[%s163 + $0x98] sm:$0xff] %v379
        %444 = vst [vmem:[%s163 + $0xa0] sm:$0xff] %v380
        %445 = vst [vmem:[%s163 + $0xa8] sm:$0xff] %v381
        %446 = vst [vmem:[%s163 + $0xb0] sm:$0xff] %v382
        %447 = vst [vmem:[%s163 + $0xb8] sm:$0xff] %v383
        %448 = vst [vmem:[%s163 + $0xc0] sm:$0xff] %v384
        %449 = vst [vmem:[%s163 + $0xc8] sm:$0xff] %v385
        %450 = vst [vmem:[%s163 + $0xd0] sm:$0xff] %v386
        %451 = vst [vmem:[%s163 + $0xd8] sm:$0xff] %v387
        %452 = vst [vmem:[%s163 + $0xe0] sm:$0xff] %v388
        %453 = vst [vmem:[%s163 + $0xe8] sm:$0xff] %v389
        %454 = vst [vmem:[%s163 + $0xf0] sm:$0xff] %v390
        %455 = vst [vmem:[%s163 + $0xf8] sm:$0xff] %v391
        %456 = vst [vmem:[%s163 + $0x100] sm:$0xff] %v392
        %457 = vst [vmem:[%s163 + $0x108] sm:$0xff] %v393
        %458 = vst [vmem:[%s163 + $0x110] sm:$0xff] %v394
        %459 = vst [vmem:[%s163 + $0x118] sm:$0xff] %v395
        %460 = vst [vmem:[%s163 + $0x120] sm:$0xff] %v396
        %461 = vst [vmem:[%s163 + $0x128] sm:$0xff] %v397
        %462 = vst [vmem:[%s163 + $0x130] sm:$0xff] %v398
        %463 = vst [vmem:[%s163 + $0x138] sm:$0xff] %v399
        %464 = vst [vmem:[%s163 + $0x140] sm:$0xff] %v400
        %465 = vst [vmem:[%s163 + $0x148] sm:$0xff] %v401
        %466 = vst [vmem:[%s163 + $0x150] sm:$0xff] %v402
        %467 = vst [vmem:[%s163 + $0x158] sm:$0xff] %v403
        %468 = vst [vmem:[%s163 + $0x160] sm:$0xff] %v404
        %469 = vst [vmem:[%s163 + $0x168] sm:$0xff] %v405
        %470 = vst [vmem:[%s163 + $0x170] sm:$0xff] %v406
        %471 = vst [vmem:[%s163 + $0x178] sm:$0xff] %v407
        %472 = vst [vmem:[%s163 + $0x180] sm:$0xff] %v408
        %473 = vst [vmem:[%s163 + $0x188] sm:$0xff] %v409
        %474 = vst [vmem:[%s163 + $0x190] sm:$0xff] %v410
        %475 = vst [vmem:[%s163 + $0x198] sm:$0xff] %v411
        %476 = vst [vmem:[%s163 + $0x1a0] sm:$0xff] %v412
        %477 = vst [vmem:[%s163 + $0x1a8] sm:$0xff] %v413
        %478 = vst [vmem:[%s163 + $0x1b0] sm:$0xff] %v414
        %479 = vst [vmem:[%s163 + $0x1b8] sm:$0xff] %v415
        %480 = vst [vmem:[%s163 + $0x1c0] sm:$0xff] %v416
        %481 = vst [vmem:[%s163 + $0x1c8] sm:$0xff] %v417
        %482 = vst [vmem:[%s163 + $0x1d0] sm:$0xff] %v418
        %483 = vst [vmem:[%s163 + $0x1d8] sm:$0xff] %v419
        %484 = vst [vmem:[%s163 + $0x1e0] sm:$0xff] %v420
        %485 = vst [vmem:[%s163 + $0x1e8] sm:$0xff] %v421
        %486 = vst [vmem:[%s163 + $0x1f0] sm:$0xff] %v422
        %487 = vst [vmem:[%s163 + $0x1f8] sm:$0xff] %v423
        %s488 = sand.u32 %s75, 1
        %s489 = scalar_lea.sflag [#allocation5], %s488
        %s490 = sand.u32 %s75, 1
        %s491 = smul.addr %s490, 512
        %s492 = scalar_lea.vmem [#allocation6], %s491
        // Predicated region
        $region33: #{tpu_custom_call.1} parent=27 // pred_check
          %p493 = pneg %p85
        $region34: #{tpu_custom_call.1} parent=27 // pred_check_branch
          %495 = sbr.rel (%p493) target = $region36
        $region35: #{tpu_custom_call.1} parent=27 // pred_region
          %s496 = smul.u32 8, %s20
          %s498 = ssub.s32 8192, 8192
          %499 = vsyncadd %s489, %s498
          %s500 = smul.addr %s496, 8
          %s501 = smul.addr %s500, 128
          %s502 = scalar_lea.hbm %s2, %s501
          %s503 = sshll.u32 %s492, 4
          %s504 = int_to_ptr.vmem [resolvable:$true] %s503
          %509 = dma.vmem_to_hbm [thread:$0]  %s504, 8192, %s502, %s489, 1024, 1024, 64
        $region36: #{tpu_custom_call.1} parent=27 // pred_fallthru
          _
      $region28: #{tpu_custom_call.1} parent=5 // pred_fallthru
        _
      %p510 = scmp.le.s32.totalorder 2, %s15
      // Predicated region
      $region37: #{tpu_custom_call.1} parent=5 // pred_check
        %p511 = pneg %p510
      $region38: #{tpu_custom_call.1} parent=5 // pred_check_branch
        %513 = sbr.rel (%p511) target = $region40
      $region39: #{tpu_custom_call.1} parent=5 // pred_region
        %s514 = ssub.s32 %s15, 2
        // Predicated region
        $region41: #{tpu_custom_call.1} parent=39 // pred_check
          %p515 = pneg %p91
        $region42: #{tpu_custom_call.1} parent=39 // pred_check_branch
          %517 = sbr.rel (%p515) target = $region44
        $region43: #{tpu_custom_call.1} parent=39 // pred_region
          %s518 = sand.u32 %s76, 1
          %s519 = scalar_lea.sflag [#allocation5], %s518
          %s520 = sand.u32 %s76, 1
          %s521 = smul.addr %s520, 512
          %s522 = scalar_lea.vmem [#allocation6], %s521
          %523 = dma.done %s519, 8192
        $region44: #{tpu_custom_call.1} parent=39 // pred_fallthru
          _
      $region40: #{tpu_custom_call.1} parent=5 // pred_fallthru
        _
    $region6: #{tpu_custom_call.1} parent=1 // loop_footer
      %s19 = sadd.s32 1, %s15
    $region7: #{tpu_custom_call.1} parent=1 // loop_footer_branch
      %14 = sbr.rel target = $region3
    $region8: #{tpu_custom_call.1} parent=1 // loop_exit
      _
    %524 = vsyncpa [#allocation4], 1
    %s525 = scalar_lea.sflag [#allocation4], 1
    %526 = vsyncpa %s525, 1
    %527 = vsyncpa [#allocation5], 1
    %s528 = scalar_lea.sflag [#allocation5], 1
    %529 = vsyncpa %s528, 1

</llo_original>
